<compile_context>
chip_gen: v7x
topology: tpu7x:2x2x1
jax: 0.10.0
libtpu: 0.0.40
codegen_flags: <defaults>
</compile_context>

<pallas_src>
import functools

import jax
import jax.numpy as jnp
from jax import lax
from jax.experimental import pallas as pl
from jax.experimental.pallas import tpu as pltpu

LANE = 128
MIN_ROWS = 16      # sublane multiple legal for both f32 (8) and bf16 (16) tiling
MAX_ROWS = 1024    # roofline plateaus ~512-1024 rows; fits VMEM on all generations
NUM_SPLITS = 2     # leading "parallel" grid axis (uses both TCs on v7x, harmless on 1 TC)


def _round_up(x, m):
    return ((x + m - 1) // m) * m


def _cdiv(a, b):
    return -(-a // b)


def _loss_mean_kernel(yp_ref, y_ref, out_ref, acc_ref, *,
                      mode, scale, steps, block_rows, rows_valid, needs_mask):
    """Per grid step: elementwise loss on one (block_rows, 128) tile, accumulate into
    a per-core (8, 128) f32 partial; emit the scaled partial on the last step."""
    c = pl.program_id(0)
    j = pl.program_id(1)

    @pl.when(j == 0)
    def _():
        acc_ref[...] = jnp.zeros_like(acc_ref)

    # Native-dtype transport; upcast to f32 for the arithmetic (required on v5e).
    yp = yp_ref[...].astype(jnp.float32)
    yt = y_ref[...].astype(jnp.float32)

    diff = yt - yp
    absdiff = jnp.abs(diff)
    if mode == "weighted_l1":
        # torch.where(diff >= 0, |y - y_pred|, |y - y_pred| * 2)
        loss = jnp.where(diff >= 0, absdiff, absdiff * 2.0)
    elif mode == "smape":
        # 2 * |y - y_pred| / (|y| + |y_pred|); the 2.0 is folded into `scale`.
        denom = jnp.abs(yt) + jnp.abs(yp)
        r = pl.reciprocal(denom, approx=True)       # EUP slot (otherwise idle)
        r = r * (2.0 - denom * r)                   # one Newton step -> ~f32 accuracy
        loss = absdiff * r
    else:
        raise ValueError(f"unknown mode {mode}")

    def _accum(x):
        # Fold the (block_rows, 128) tile into the (8, 128) accumulator: pure VPU adds,
        # tile-aligned reshape (no lane movement), no per-step cross-lane reduction.
        acc_ref[...] += x.reshape(block_rows // 8, 8, LANE).sum(axis=0)

    if needs_mask:
        # Only the boundary block pays for the mask; full blocks take the cheap path.
        start = (c * steps + j) * block_rows
        is_full = start + block_rows <= rows_valid

        @pl.when(is_full)
        def _():
            _accum(loss)

        @pl.when(jnp.logical_not(is_full))
        def _():
            row_ids = lax.broadcasted_iota(jnp.int32, (block_rows, LANE), 0)
            _accum(jnp.where(start + row_ids < rows_valid, loss, 0.0))
    else:
        _accum(loss)

    @pl.when(j == pl.num_programs(1) - 1)
    def _():
        # scale = 1/n (weighted_l1) or 2/n (smape), baked in at trace time.
        out_ref[...] = acc_ref[...] * scale


@functools.partial(jax.jit, static_argnames="loss_name")
def custom_loss_pallas(y_pred, y, loss_name="weighted_l1"):
    """Equivalent of custom_loss(loss_func)(y_pred, y): elementwise loss -> mean."""
    assert y_pred.shape == y.shape
    if loss_name not in ("weighted_l1", "smape"):
        raise ValueError(f"unknown loss {loss_name}")

    n = int(y_pred.size)
    assert n > 0
    yp = y_pred.reshape(-1)   # keep native dtype (bf16 stays bf16 in HBM)
    yt = y.reshape(-1)

    # Only pad to the next lane multiple (rare; value 1.0 contributes exactly 0 loss
    # for both losses). The block-partition remainder is masked in-kernel instead of
    # paying a full-array pad copy.
    n_lane = _round_up(n, LANE)
    if n_lane != n:
        yp = jnp.pad(yp, (0, n_lane - n), constant_values=1.0)
        yt = jnp.pad(yt, (0, n_lane - n), constant_values=1.0)
    rows = n_lane // LANE
    yp = yp.reshape(rows, LANE)
    yt = yt.reshape(rows, LANE)

    # Tight block partition: smallest MIN_ROWS-aligned block (<= MAX_ROWS) that covers
    # `rows` in NUM_SPLITS * steps blocks.
    steps = _cdiv(rows, NUM_SPLITS * MAX_ROWS)
    block_rows = _round_up(_cdiv(rows, NUM_SPLITS * steps), MIN_ROWS)
    num_blocks = _cdiv(rows, block_rows)
    needs_mask = NUM_SPLITS * steps * block_rows > rows

    if num_blocks == NUM_SPLITS * steps:
        idx_map = lambda c, j: (c * steps + j, 0)
    else:
        # Tiny inputs: some logical grid points have no data; clamp to the last real
        # block (they are fully masked in-kernel and contribute 0).
        last_block = num_blocks - 1
        idx_map = lambda c, j: (jnp.minimum(c * steps + j, last_block), 0)

    # Fold 1/n (and the smape 2.0) into a single compile-time scalar.
    scale = (2.0 if loss_name == "smape" else 1.0) / n

    kernel = functools.partial(
        _loss_mean_kernel, mode=loss_name, scale=scale, steps=steps,
        block_rows=block_rows, rows_valid=rows, needs_mask=needs_mask)

    partials = pl.pallas_call(
        kernel,
        out_shape=jax.ShapeDtypeStruct((NUM_SPLITS * 8, LANE), jnp.float32),
        grid_spec=pltpu.PrefetchScalarGridSpec(
            num_scalar_prefetch=0,
            grid=(NUM_SPLITS, steps),
            in_specs=[
                pl.BlockSpec((block_rows, LANE), idx_map),
                pl.BlockSpec((block_rows, LANE), idx_map),
            ],
            out_specs=pl.BlockSpec((8, LANE), lambda c, j: (c, 0)),
            scratch_shapes=[pltpu.VMEM((8, LANE), jnp.float32)],
        ),
        compiler_params=pltpu.CompilerParams(
            dimension_semantics=("parallel", "arbitrary"),
        ),
    )(yp, yt)

    # Tiny final reduction of the (NUM_SPLITS*8, 128) already-scaled partials.
    return jnp.sum(partials)


def _ref_loss(y_pred, y, loss_name):
    y_pred = y_pred.astype(jnp.float32)
    y = y.astype(jnp.float32)
    diff = y - y_pred
    a = jnp.abs(diff)
    if loss_name == "weighted_l1":
        loss = jnp.where(diff >= 0, a, a * 2.0)
    else:
        loss = 2.0 * a / (jnp.abs(y) + jnp.abs(y_pred))
    return jnp.mean(loss)


if __name__ == "__main__":
    key = jax.random.PRNGKey(0)
    k1, k2 = jax.random.split(key)

    # Small forecast-shaped inputs: (batch=2, pred_len=8, channels=32).
    # rows=4 < one block -> exercises the clamped-duplicate-block + fully-masked path.
    y_pred = jax.random.normal(k1, (2, 8, 32), dtype=jnp.float32)
    y = jax.random.normal(k2, (2, 8, 32), dtype=jnp.float32)
    loss_wl1 = custom_loss_pallas(y_pred, y, "weighted_l1")
    loss_smape = custom_loss_pallas(y_pred, y, "smape")
    jax.block_until_ready((loss_wl1, loss_smape))
    assert jnp.allclose(loss_wl1, _ref_loss(y_pred, y, "weighted_l1"), rtol=1e-5, atol=1e-5)
    assert jnp.allclose(loss_smape, _ref_loss(y_pred, y, "smape"), rtol=1e-5, atol=1e-5)

    # n multiple of 128 but rows not divisible by the block partition:
    # exercises the in-kernel boundary-block mask (no host-side pad copy).
    y_pred1 = jax.random.normal(k1, (3, 11, 128), dtype=jnp.float32)
    y1 = jax.random.normal(k2, (3, 11, 128), dtype=jnp.float32)
    a1 = custom_loss_pallas(y_pred1, y1, "weighted_l1")
    a2 = custom_loss_pallas(y_pred1, y1, "smape")
    jax.block_until_ready((a1, a2))
    assert jnp.allclose(a1, _ref_loss(y_pred1, y1, "weighted_l1"), rtol=1e-5, atol=1e-5)
    assert jnp.allclose(a2, _ref_loss(y_pred1, y1, "smape"), rtol=1e-5, atol=1e-5)

    # Multi-step grid per core (rows=2400, 2 steps x 608-row blocks) + masked tail block.
    y_pred2 = jax.random.normal(k1, (4, 64, 1200), dtype=jnp.float32)
    y2 = jax.random.normal(k2, (4, 64, 1200), dtype=jnp.float32)
    l1 = custom_loss_pallas(y_pred2, y2, "weighted_l1")
    l2 = custom_loss_pallas(y_pred2, y2, "smape")
    jax.block_until_ready((l1, l2))
    assert jnp.allclose(l1, _ref_loss(y_pred2, y2, "weighted_l1"), rtol=1e-5, atol=1e-5)
    assert jnp.allclose(l2, _ref_loss(y_pred2, y2, "smape"), rtol=1e-5, atol=1e-5)

    # Ragged numel (not a multiple of 128): exercises the minimal pad-with-1.0 path.
    y_pred3 = jax.random.normal(k1, (3, 7, 11), dtype=jnp.float32)
    y3 = jax.random.normal(k2, (3, 7, 11), dtype=jnp.float32)
    r1 = custom_loss_pallas(y_pred3, y3, "weighted_l1")
    r2 = custom_loss_pallas(y_pred3, y3, "smape")
    jax.block_until_ready((r1, r2))
    assert jnp.allclose(r1, _ref_loss(y_pred3, y3, "weighted_l1"), rtol=1e-5, atol=1e-5)
    assert jnp.allclose(r2, _ref_loss(y_pred3, y3, "smape"), rtol=1e-5, atol=1e-5)

    # bf16 transport path (upcast happens inside the kernel only), partial block DMA.
    yp_bf = y_pred1.astype(jnp.bfloat16)
    y_bf = y1.astype(jnp.bfloat16)
    lbf = custom_loss_pallas(yp_bf, y_bf, "weighted_l1")
    jax.block_until_ready(lbf)
    assert jnp.allclose(lbf, _ref_loss(yp_bf, y_bf, "weighted_l1"), rtol=1e-3, atol=1e-3)

    print("KERNEL_OK")
</pallas_src>

<mosaic_0001>
module attributes {stable_mosaic.version = 11 : i64} {
  func.func @_loss_mean_kernel(%arg0: i32, %arg1: i32, %arg2: memref<16x128xf32, #tpu.memory_space<vmem>>, %arg3: memref<16x128xf32, #tpu.memory_space<vmem>>, %arg4: memref<8x128xf32, #tpu.memory_space<vmem>>, %arg5: memref<8x128xf32, #tpu.memory_space<vmem>>) attributes {dimension_semantics = [#tpu.dimension_semantics<parallel>, #tpu.dimension_semantics<arbitrary>], iteration_bounds = array<i64: 2, 1>, scalar_prefetch = 0 : i64, scratch_operands = 1 : i64, tpu.core_type = #tpu.core_type<tc>, window_params = [{transform_indices = @transform_0, window_bounds = array<i64: 16, 128>}, {transform_indices = @transform_1, window_bounds = array<i64: 16, 128>}, {transform_indices = @transform_2, window_bounds = array<i64: 8, 128>}]} {
    %c0_i32 = arith.constant 0 : i32
    %0 = arith.cmpi eq, %arg1, %c0_i32 : i32
    %1 = arith.extui %0 : i1 to i32
    %c0_i32_0 = arith.constant 0 : i32
    %2 = arith.cmpi ne, %1, %c0_i32_0 : i32
    scf.if %2 {
      %cst_10 = arith.constant 0.000000e+00 : f32
      %25 = vector.broadcast %cst_10 : f32 to vector<8x128xf32>
      %c0_11 = arith.constant 0 : index
      %c0_12 = arith.constant 0 : index
      %26 = vector.load %arg5[%c0_11, %c0_12] : memref<8x128xf32, #tpu.memory_space<vmem>>, vector<8x128xf32>
      tpu.vector_store %arg5[%c0_11, %c0_12], %25 {strides = array<i32>} : memref<8x128xf32, #tpu.memory_space<vmem>>, vector<8x128xf32>,
    } else {
    }
    %c0 = arith.constant 0 : index
    %c0_1 = arith.constant 0 : index
    %3 = vector.load %arg2[%c0, %c0_1] : memref<16x128xf32, #tpu.memory_space<vmem>>, vector<16x128xf32>
    %c0_2 = arith.constant 0 : index
    %c0_3 = arith.constant 0 : index
    %4 = vector.load %arg3[%c0_2, %c0_3] : memref<16x128xf32, #tpu.memory_space<vmem>>, vector<16x128xf32>
    %5 = arith.subf %4, %3 : vector<16x128xf32>
    %6 = math.absf %5 : vector<16x128xf32>
    %cst = arith.constant 0.000000e+00 : f32
    %7 = vector.broadcast %cst : f32 to vector<16x128xf32>
    %8 = arith.cmpf oge, %5, %7 : vector<16x128xf32>
    %cst_4 = arith.constant 2.000000e+00 : f32
    %9 = vector.broadcast %cst_4 : f32 to vector<16x128xf32>
    %10 = arith.mulf %6, %9 : vector<16x128xf32>
    %11 = arith.select %8, %6, %10 : vector<16x128xi1>, vector<16x128xf32>
    %c1_i32 = arith.constant 1 : i32
    %12 = arith.muli %arg0, %c1_i32 : i32
    %13 = arith.addi %12, %arg1 : i32
    %c16_i32 = arith.constant 16 : i32
    %14 = arith.muli %13, %c16_i32 : i32
    %c16_i32_5 = arith.constant 16 : i32
    %15 = arith.addi %14, %c16_i32_5 : i32
    %c4_i32 = arith.constant 4 : i32
    %16 = arith.cmpi sle, %15, %c4_i32 : i32
    %17 = arith.extui %16 : i1 to i32
    %c0_i32_6 = arith.constant 0 : i32
    %18 = arith.cmpi ne, %17, %c0_i32_6 : i32
    scf.if %18 {
      %c0_10 = arith.constant 0 : index
      %c0_11 = arith.constant 0 : index
      %25 = vector.load %arg5[%c0_10, %c0_11] : memref<8x128xf32, #tpu.memory_space<vmem>>, vector<8x128xf32>
      %26 = vector.shape_cast %11 : vector<16x128xf32> to vector<2x8x128xf32>
      %cst_12 = arith.constant dense<0.000000e+00> : vector<8x128xf32>
      %27 = vector.multi_reduction <add>, %26, %cst_12 [0] : vector<2x8x128xf32> to vector<8x128xf32>
      %28 = arith.addf %25, %27 : vector<8x128xf32>
      %c0_13 = arith.constant 0 : index
      %c0_14 = arith.constant 0 : index
      %29 = vector.load %arg5[%c0_13, %c0_14] : memref<8x128xf32, #tpu.memory_space<vmem>>, vector<8x128xf32>
      tpu.vector_store %arg5[%c0_13, %c0_14], %28 {strides = array<i32>} : memref<8x128xf32, #tpu.memory_space<vmem>>, vector<8x128xf32>,
    } else {
    }
    %true = arith.constant true
    %19 = arith.xori %16, %true : i1
    %20 = arith.extui %19 : i1 to i32
    %c0_i32_7 = arith.constant 0 : i32
    %21 = arith.cmpi ne, %20, %c0_i32_7 : i32
    scf.if %21 {
      %25 = tpu.iota {dimensions = array<i32: 0>} : vector<16x128xi32>
      %26 = vector.broadcast %14 : i32 to vector<16x128xi32>
      %27 = arith.addi %26, %25 : vector<16x128xi32>
      %c4_i32_10 = arith.constant 4 : i32
      %28 = vector.broadcast %c4_i32_10 : i32 to vector<16x128xi32>
      %29 = arith.cmpi slt, %27, %28 : vector<16x128xi32>
      %cst_11 = arith.constant 0.000000e+00 : f32
      %30 = vector.broadcast %cst_11 : f32 to vector<16x128xf32>
      %31 = arith.select %29, %11, %30 : vector<16x128xi1>, vector<16x128xf32>
      %c0_12 = arith.constant 0 : index
      %c0_13 = arith.constant 0 : index
      %32 = vector.load %arg5[%c0_12, %c0_13] : memref<8x128xf32, #tpu.memory_space<vmem>>, vector<8x128xf32>
      %33 = vector.shape_cast %31 : vector<16x128xf32> to vector<2x8x128xf32>
      %cst_14 = arith.constant dense<0.000000e+00> : vector<8x128xf32>
      %34 = vector.multi_reduction <add>, %33, %cst_14 [0] : vector<2x8x128xf32> to vector<8x128xf32>
      %35 = arith.addf %32, %34 : vector<8x128xf32>
      %c0_15 = arith.constant 0 : index
      %c0_16 = arith.constant 0 : index
      %36 = vector.load %arg5[%c0_15, %c0_16] : memref<8x128xf32, #tpu.memory_space<vmem>>, vector<8x128xf32>
      tpu.vector_store %arg5[%c0_15, %c0_16], %35 {strides = array<i32>} : memref<8x128xf32, #tpu.memory_space<vmem>>, vector<8x128xf32>,
    } else {
    }
    %c0_i32_8 = arith.constant 0 : i32
    %22 = arith.cmpi eq, %arg1, %c0_i32_8 : i32
    %23 = arith.extui %22 : i1 to i32
    %c0_i32_9 = arith.constant 0 : i32
    %24 = arith.cmpi ne, %23, %c0_i32_9 : i32
    scf.if %24 {
      %c0_10 = arith.constant 0 : index
      %c0_11 = arith.constant 0 : index
      %25 = vector.load %arg5[%c0_10, %c0_11] : memref<8x128xf32, #tpu.memory_space<vmem>>, vector<8x128xf32>
      %cst_12 = arith.constant 0.001953125 : f32
      %26 = vector.broadcast %cst_12 : f32 to vector<8x128xf32>
      %27 = arith.mulf %25, %26 : vector<8x128xf32>
      %c0_13 = arith.constant 0 : index
      %c0_14 = arith.constant 0 : index
      %28 = vector.load %arg4[%c0_13, %c0_14] : memref<8x128xf32, #tpu.memory_space<vmem>>, vector<8x128xf32>
      tpu.vector_store %arg4[%c0_13, %c0_14], %27 {strides = array<i32>} : memref<8x128xf32, #tpu.memory_space<vmem>>, vector<8x128xf32>,
    } else {
    }
    return
  }
  func.func @transform_0(%arg0: i32, %arg1: i32) -> (i32, i32) {
    %c1_i32 = arith.constant 1 : i32
    %0 = arith.muli %arg0, %c1_i32 : i32
    %1 = arith.addi %0, %arg1 : i32
    %c0_i32 = arith.constant 0 : i32
    %2 = arith.minsi %1, %c0_i32 : i32
    %c0_i32_0 = arith.constant 0 : i32
    %c0_i32_1 = arith.constant 0 : i32
    return %2, %c0_i32_0 : i32, i32
  }
  func.func @transform_1(%arg0: i32, %arg1: i32) -> (i32, i32) {
    %c1_i32 = arith.constant 1 : i32
    %0 = arith.muli %arg0, %c1_i32 : i32
    %1 = arith.addi %0, %arg1 : i32
    %c0_i32 = arith.constant 0 : i32
    %2 = arith.minsi %1, %c0_i32 : i32
    %c0_i32_0 = arith.constant 0 : i32
    %c0_i32_1 = arith.constant 0 : i32
    return %2, %c0_i32_0 : i32, i32
  }
  func.func @transform_2(%arg0: i32, %arg1: i32) -> (i32, i32) {
    %c0_i32 = arith.constant 0 : i32
    %c0_i32_0 = arith.constant 0 : i32
    return %arg0, %c0_i32 : i32, i32
  }
}

</mosaic_0001>

<llo_original>
// kernel: custom_loss_pallas.1
$region0: #{custom_loss_pallas.1}
  #allocation0 [shape = 'u32[]', space=smem, size = 0x4, offset = 0x4, fixed_abs, tag = 'smem constant byte address 0x4 - core index']
  #allocation1 [shape = 'u32[144,128]{1,0:T(1,128)}', space=vmem, size = 0x12000, scoped, tag = 'internal scratch']
  #allocation2 [shape = 'f32[8,128]{1,0:T(8,128)}', space=vmem, size = 0x1000, scoped, tag = 'scratch operand']
  %s0 = inlined_call_operand.vmem [shape: f32[4,128], index: 0, kind: input, shape index: {}]
  %s1 = inlined_call_operand.vmem [shape: f32[4,128], index: 1, kind: input, shape index: {}]
  %s2 = inlined_call_operand.vmem [shape: f32[16,128], index: 2, kind: output, shape index: {}]
  %s3 = sld [smem:[#allocation0]]
  $region57: #{custom_loss_pallas.1} parent=0
    _
  %s5 = ssub.s32 1, %s3
  %s6 = scalar_select 0, %s5, %s3
  loop: start=0, step=1, limit=4
  $region2: #{custom_loss_pallas.1} parent=0 // loop_pre_header
    _
  $region3: #{custom_loss_pallas.1} parent=0 // loop_header
    %s8 = sphi 0, %s12
    %p9 = scmp.ge.s32.totalorder %s8, 4
    %s15 = sphi 0, %s27
    %s16 = sphi 0, %s23
    %s17 = sphi 0, %s15
    %s18 = sphi 0, %s16
    %s19 = sphi 0, %s17
    %s20 = sphi 0, %s18
    %s36 = sphi 0, %s38
    %s39 = sphi 0, %s36
    %s40 = sphi 0, %s39
    %s56 = sphi 0, %s40
    %s68 = sphi 0, %s70
    %s71 = sphi 0, %s68
    %s72 = sphi 0, %s71
    %s88 = sphi 0, %s72
    %s94 = sphi 0, %s96
    %s97 = sphi 0, %s94
    %s98 = sphi 0, %s97
    %s114 = sphi 0, %s98
  $region4: #{custom_loss_pallas.1} parent=0 // loop_header_branch
    %11 = sbr.rel (%p9) target = $region8
  $region5: #{custom_loss_pallas.1} parent=0 // loop_body
    %s13 = ssub.s32 %s8, 1
    %s14 = ssub.s32 %s8, 2
    %s21 = sadd.s32 1, %s16
    %p22 = scmp.ge.s32.totalorder %s21, 1
    %s23 = scalar_select %p22, 0, %s21
    %s24 = sadd.s32 1, %s15
    %s25 = scalar_select %p22, %s24, %s15
    %p26 = scmp.ge.s32.totalorder %s25, 2
    %s27 = scalar_select %p26, 0, %s25
    %s28 = sadd.s32 %s15, %s16
    %p29 = scmp.lt.s32.totalorder %s28, 0
    %s30 = scalar_select %p29, %s28, 0
    %s31 = sadd.s32 %s27, %s23
    %p32 = scmp.lt.s32.totalorder %s31, 0
    %s33 = scalar_select %p32, %s31, 0
    %s34 = ssub.s32 %s30, %s33
    %p35 = scmp.eq.s32.totalorder %s34, 0
    %s37 = sadd.s32 %s36, 1
    %s38 = scalar_select %p35, %s36, %s37
    %p41 = pneg %p35
    %p42 = scmp.eq.s32.totalorder %s8, 1
    %p43 = por %p41, %p42
    %p44 = scmp.ne.s32.totalorder %s36, %s39
    %p45 = scmp.eq.s32.totalorder %s8, 0
    %p46 = por %p44, %p45
    %p47 = scmp.ne.s32.totalorder %s36, %s39
    %p48 = scmp.eq.s32.totalorder %s13, 1
    %p49 = por %p47, %p48
    %p50 = scmp.ne.s32.totalorder %s39, %s40
    %p51 = scmp.eq.s32.totalorder %s13, 0
    %p52 = por %p50, %p51
    %p53 = scmp.ne.s32.totalorder %s39, %s40
    %p54 = scmp.eq.s32.totalorder %s14, 1
    %p55 = por %p53, %p54
    %p57 = scmp.ne.s32.totalorder %s40, %s56
    %p58 = scmp.eq.s32.totalorder %s14, 0
    %p59 = por %p57, %p58
    %s60 = sadd.s32 %s15, %s16
    %p61 = scmp.lt.s32.totalorder %s60, 0
    %s62 = scalar_select %p61, %s60, 0
    %s63 = sadd.s32 %s27, %s23
    %p64 = scmp.lt.s32.totalorder %s63, 0
    %s65 = scalar_select %p64, %s63, 0
    %s66 = ssub.s32 %s62, %s65
    %p67 = scmp.eq.s32.totalorder %s66, 0
    %s69 = sadd.s32 %s68, 1
    %s70 = scalar_select %p67, %s68, %s69
    %p73 = pneg %p67
    %p74 = scmp.eq.s32.totalorder %s8, 1
    %p75 = por %p73, %p74
    %p76 = scmp.ne.s32.totalorder %s68, %s71
    %p77 = scmp.eq.s32.totalorder %s8, 0
    %p78 = por %p76, %p77
    %p79 = scmp.ne.s32.totalorder %s68, %s71
    %p80 = scmp.eq.s32.totalorder %s13, 1
    %p81 = por %p79, %p80
    %p82 = scmp.ne.s32.totalorder %s71, %s72
    %p83 = scmp.eq.s32.totalorder %s13, 0
    %p84 = por %p82, %p83
    %p85 = scmp.ne.s32.totalorder %s71, %s72
    %p86 = scmp.eq.s32.totalorder %s14, 1
    %p87 = por %p85, %p86
    %p89 = scmp.ne.s32.totalorder %s72, %s88
    %p90 = scmp.eq.s32.totalorder %s14, 0
    %p91 = por %p89, %p90
    %s92 = ssub.s32 %s15, %s27
    %p93 = scmp.eq.s32.totalorder %s92, 0
    %s95 = sadd.s32 %s94, 1
    %s96 = scalar_select %p93, %s94, %s95
    %p99 = pneg %p93
    %p100 = scmp.eq.s32.totalorder %s8, 1
    %p101 = por %p99, %p100
    %p102 = scmp.ne.s32.totalorder %s94, %s97
    %p103 = scmp.eq.s32.totalorder %s8, 0
    %p104 = por %p102, %p103
    %p105 = scmp.ne.s32.totalorder %s94, %s97
    %p106 = scmp.eq.s32.totalorder %s13, 1
    %p107 = por %p105, %p106
    %p108 = scmp.ne.s32.totalorder %s97, %s98
    %p109 = scmp.eq.s32.totalorder %s13, 0
    %p110 = por %p108, %p109
    %p111 = scmp.ne.s32.totalorder %s97, %s98
    %p112 = scmp.eq.s32.totalorder %s14, 1
    %p113 = por %p111, %p112
    %p115 = scmp.ne.s32.totalorder %s98, %s114
    %p116 = scmp.eq.s32.totalorder %s14, 0
    %p117 = por %p115, %p116
    %p118 = scmp.le.s32.totalorder 1, %s8
    %p119 = scmp.lt.s32.totalorder %s8, 3
    %p120 = pnand %p118, %p119
    %p121 = pneg %p120
    // Predicated region
    $region9: #{custom_loss_pallas.1} parent=5 // pred_check
      _
    $region10: #{custom_loss_pallas.1} parent=5 // pred_check_branch
      %123 = sbr.rel (%p120) target = $region12
    $region11: #{custom_loss_pallas.1} parent=5 // pred_region
      %s124 = ssub.s32 %s8, 1
    $region12: #{custom_loss_pallas.1} parent=5 // pred_fallthru
      _
    %p125 = scmp.lt.s32.totalorder %s8, 2
    // Predicated region
    $region13: #{custom_loss_pallas.1} parent=5 // pred_check
      %p126 = pneg %p125
    $region14: #{custom_loss_pallas.1} parent=5 // pred_check_branch
      %128 = sbr.rel (%p126) target = $region16
    $region15: #{custom_loss_pallas.1} parent=5 // pred_region
      // Predicated region
      $region17: #{custom_loss_pallas.1} parent=15 // pred_check
        %p129 = pneg %p46
      $region18: #{custom_loss_pallas.1} parent=15 // pred_check_branch
        %131 = sbr.rel (%p129) target = $region20
      $region19: #{custom_loss_pallas.1} parent=15 // pred_region
        %s132 = sadd.s32 %s15, %s16
        %p133 = scmp.lt.s32.totalorder %s132, 0
        %s134 = scalar_select %p133, %s132, 0
        %s135 = smul.u32 4, %s134
        %s136 = ssub.s32 1, %s135
        %s137 = smul.u32 64, %s136
        %p138 = scmp.lt.s32.totalorder %s135, 0
        %s139 = scalar_select %p138, %s135, 0
        %s140 = smul.addr %s139, 4
        %s141 = scalar_lea.vmem %s0, %s140
        %s142 = sadd.s32 %s15, %s16
        %p143 = scmp.lt.s32.totalorder %s142, 0
        %s144 = scalar_select %p143, %s142, 0
        %s145 = smul.u32 4, %s144
        %s146 = ssub.s32 1, %s145
        %s147 = smul.u32 64, %s146
      $region20: #{custom_loss_pallas.1} parent=15 // pred_fallthru
        _
      // Predicated region
      $region21: #{custom_loss_pallas.1} parent=15 // pred_check
        %p148 = pneg %p78
      $region22: #{custom_loss_pallas.1} parent=15 // pred_check_branch
        %150 = sbr.rel (%p148) target = $region24
      $region23: #{custom_loss_pallas.1} parent=15 // pred_region
        %s151 = sadd.s32 %s15, %s16
        %p152 = scmp.lt.s32.totalorder %s151, 0
        %s153 = scalar_select %p152, %s151, 0
        %s154 = smul.u32 4, %s153
        %s155 = ssub.s32 1, %s154
        %s156 = smul.u32 64, %s155
        %p157 = scmp.lt.s32.totalorder %s154, 0
        %s158 = scalar_select %p157, %s154, 0
        %s159 = smul.addr %s158, 4
        %s160 = scalar_lea.vmem %s1, %s159
        %s161 = sadd.s32 %s15, %s16
        %p162 = scmp.lt.s32.totalorder %s161, 0
        %s163 = scalar_select %p162, %s161, 0
        %s164 = smul.u32 4, %s163
        %s165 = ssub.s32 1, %s164
        %s166 = smul.u32 64, %s165
      $region24: #{custom_loss_pallas.1} parent=15 // pred_fallthru
        _
    $region16: #{custom_loss_pallas.1} parent=5 // pred_fallthru
      _
    %p167 = scmp.le.s32.totalorder 1, %s8
    %p168 = scmp.lt.s32.totalorder %s8, 3
    %p169 = pnand %p167, %p168
    %p170 = pneg %p169
    // Predicated region
    $region25: #{custom_loss_pallas.1} parent=5 // pred_check
      _
    $region26: #{custom_loss_pallas.1} parent=5 // pred_check_branch
      %172 = sbr.rel (%p169) target = $region28
    $region27: #{custom_loss_pallas.1} parent=5 // pred_region
      %s173 = ssub.s32 %s8, 1
      %s174 = sadd.s32 %s17, %s18
      %p175 = scmp.lt.s32.totalorder %s174, 0
      %s176 = scalar_select %p175, %s174, 0
      %s177 = smul.u32 4, %s176
      %s178 = ssub.s32 1, %s177
      %s179 = smul.u32 64, %s178
      %p180 = scmp.lt.s32.totalorder %s177, 0
      %s181 = scalar_select %p180, %s177, 0
      %s182 = smul.addr %s181, 4
      %s183 = scalar_lea.vmem %s0, %s182
      %p184 = pneg %p52
      %p185 = pneg %p49
      %s186 = sadd.s32 %s17, %s18
      %p187 = scmp.lt.s32.totalorder %s186, 0
      %s188 = scalar_select %p187, %s186, 0
      %s189 = smul.u32 4, %s188
      %s190 = ssub.s32 1, %s189
      %s191 = smul.u32 64, %s190
      %p192 = scmp.lt.s32.totalorder %s189, 0
      %s193 = scalar_select %p192, %s189, 0
      %s194 = smul.addr %s193, 4
      %s195 = scalar_lea.vmem %s1, %s194
      %p196 = pneg %p84
      %p197 = pneg %p81
      %p198 = pneg %p110
      %p199 = pneg %p107
      %p200 = scmp.lt.s32.totalorder %s17, 1
      %s201 = scalar_select %p200, %s17, 1
      %s202 = smul.addr %s201, 8
      %s203 = scalar_lea.vmem %s2, %s202
      %s204 = sadd.s32 %s17, %s18
      %p205 = scmp.lt.s32.totalorder %s204, 0
      %s206 = scalar_select %p205, %s204, 0
      %s207 = smul.u32 4, %s206
      %s208 = ssub.s32 1, %s207
      %s209 = smul.u32 64, %s208
      %p210 = scmp.lt.s32.totalorder %s207, 0
      %s211 = scalar_select %p210, %s207, 0
      %s212 = smul.addr %s211, 4
      %s213 = scalar_lea.vmem %s0, %s212
      %s214 = sadd.s32 %s17, %s18
      %p215 = scmp.lt.s32.totalorder %s214, 0
      %s216 = scalar_select %p215, %s214, 0
      %s217 = smul.u32 4, %s216
      %s218 = ssub.s32 1, %s217
      %s219 = smul.u32 64, %s218
      %s220 = sadd.s32 %s17, %s18
      %p221 = scmp.lt.s32.totalorder %s220, 0
      %s222 = scalar_select %p221, %s220, 0
      %s223 = smul.u32 4, %s222
      %s224 = ssub.s32 1, %s223
      %s225 = smul.u32 64, %s224
      %p226 = scmp.lt.s32.totalorder %s223, 0
      %s227 = scalar_select %p226, %s223, 0
      %s228 = smul.addr %s227, 4
      %s229 = scalar_lea.vmem %s1, %s228
      %s230 = sadd.s32 %s17, %s18
      %p231 = scmp.lt.s32.totalorder %s230, 0
      %s232 = scalar_select %p231, %s230, 0
      %s233 = smul.u32 4, %s232
      %s234 = ssub.s32 1, %s233
      %s235 = smul.u32 64, %s234
      %p236 = scmp.lt.s32.totalorder %s17, 1
      %s237 = scalar_select %p236, %s17, 1
      %s238 = smul.addr %s237, 8
      %s239 = scalar_lea.vmem %s2, %s238
      %p240 = scmp.eq.s32.totalorder %s18, 0
      // Predicated region
      $region29: #{custom_loss_pallas.1} parent=27 // pred_check
        %p241 = pneg %p240
      $region30: #{custom_loss_pallas.1} parent=27 // pred_check_branch
        %243 = sbr.rel (%p241) target = $region32
      $region31: #{custom_loss_pallas.1} parent=27 // pred_region
        %244 = vst [vmem:[#allocation2] sm:$0xff] 0.0
      $region32: #{custom_loss_pallas.1} parent=27 // pred_fallthru
        _
      %v245 = vld [vmem:[%s213] sm:$0xff]
      %v246 = vld [vmem:[%s213 + $0x8] sm:$0xff]
      %v247 = vld [vmem:[%s229] sm:$0xff]
      %v248 = vld [vmem:[%s229 + $0x8] sm:$0xff]
      %v249 = vsub.f32 %v247, %v245
      %v250 = vsub.f32 %v248, %v246
      %v251 = vand.u32 2147483647, %v249
      %v252 = vand.u32 2147483647, %v250
      %vm253 = vcmp.ge.f32.partialorder %v249, 0.0
      %vm254 = vcmp.ge.f32.partialorder %v250, 0.0
      %v255 = vmul.f32 %v251, 2.0
      %v256 = vmul.f32 %v252, 2.0
      %v257 = vsel %vm253, %v251, %v255
      %v258 = vsel %vm254, %v252, %v256
      %s259 = sadd.s32 %s17, %s18
      %s260 = smul.u32 %s259, 16
      %s261 = sadd.s32 %s260, 16
      %p262 = scmp.le.s32.totalorder %s261, 4
      // Predicated region
      $region33: #{custom_loss_pallas.1} parent=27 // pred_check
        %p263 = pneg %p262
      $region34: #{custom_loss_pallas.1} parent=27 // pred_check_branch
        %265 = sbr.rel (%p263) target = $region36
      $region35: #{custom_loss_pallas.1} parent=27 // pred_region
        %v266 = vld [vmem:[#allocation2] sm:$0xff]
        %v267 = vadd.f32 %v257, %v258
        %v268 = vadd.f32 %v266, %v267
        %269 = vst [vmem:[#allocation2] sm:$0xff] %v268
      $region36: #{custom_loss_pallas.1} parent=27 // pred_fallthru
        _
      %p270 = scmp.gt.s32.totalorder %s261, 4
      // Predicated region
      $region37: #{custom_loss_pallas.1} parent=27 // pred_check
        %p271 = pneg %p270
      $region38: #{custom_loss_pallas.1} parent=27 // pred_check_branch
        %273 = sbr.rel (%p271) target = $region40
      $region39: #{custom_loss_pallas.1} parent=27 // pred_region
        %v274 = vlaneseq
        %v275 = vshrl.u32 %v274, 7
        %v276 = vadd.s32 %v275, 8
        %v277 = vstv %s260
        %v278 = vadd.s32 %v277, %v275
        %v279 = vadd.s32 %v277, %v276
        %vm280 = vcmp.lt.s32.totalorder %v278, 4
        %vm281 = vcmp.lt.s32.totalorder %v279, 4
        %v282 = vsel %vm280, %v257, 0.0
        %v283 = vsel %vm281, %v258, 0.0
        %v284 = vld [vmem:[#allocation2] sm:$0xff]
        %v285 = vadd.f32 %v282, %v283
        %v286 = vadd.f32 %v284, %v285
        %287 = vst [vmem:[#allocation2] sm:$0xff] %v286
      $region40: #{custom_loss_pallas.1} parent=27 // pred_fallthru
        _
      // Predicated region
      $region41: #{custom_loss_pallas.1} parent=27 // pred_check
        %p288 = pneg %p240
      $region42: #{custom_loss_pallas.1} parent=27 // pred_check_branch
        %290 = sbr.rel (%p288) target = $region44
      $region43: #{custom_loss_pallas.1} parent=27 // pred_region
        %v291 = vld [vmem:[#allocation2] sm:$0xff]
        %v292 = vmul.f32 %v291, 0.001953125
        %293 = vst [vmem:[%s239] sm:$0xff] %v292
      $region44: #{custom_loss_pallas.1} parent=27 // pred_fallthru
        _
      %p294 = scmp.lt.s32.totalorder %s17, 1
      %s295 = scalar_select %p294, %s17, 1
      %s296 = smul.addr %s295, 8
      %s297 = scalar_lea.vmem %s2, %s296
      // Predicated region
      $region45: #{custom_loss_pallas.1} parent=27 // pred_check
        %p298 = pneg %p107
      $region46: #{custom_loss_pallas.1} parent=27 // pred_check_branch
        %300 = sbr.rel (%p298) target = $region48
      $region47: #{custom_loss_pallas.1} parent=27 // pred_region
        _
      $region48: #{custom_loss_pallas.1} parent=27 // pred_fallthru
        _
    $region28: #{custom_loss_pallas.1} parent=5 // pred_fallthru
      _
    %p301 = scmp.le.s32.totalorder 2, %s8
    // Predicated region
    $region49: #{custom_loss_pallas.1} parent=5 // pred_check
      %p302 = pneg %p301
    $region50: #{custom_loss_pallas.1} parent=5 // pred_check_branch
      %304 = sbr.rel (%p302) target = $region52
    $region51: #{custom_loss_pallas.1} parent=5 // pred_region
      %s305 = ssub.s32 %s8, 2
      // Predicated region
      $region53: #{custom_loss_pallas.1} parent=51 // pred_check
        %p306 = pneg %p113
      $region54: #{custom_loss_pallas.1} parent=51 // pred_check_branch
        %308 = sbr.rel (%p306) target = $region56
      $region55: #{custom_loss_pallas.1} parent=51 // pred_region
        %p309 = scmp.lt.s32.totalorder %s19, 1
        %s310 = scalar_select %p309, %s19, 1
        %s311 = smul.addr %s310, 8
        %s312 = scalar_lea.vmem %s2, %s311
      $region56: #{custom_loss_pallas.1} parent=51 // pred_fallthru
        _
    $region52: #{custom_loss_pallas.1} parent=5 // pred_fallthru
      _
  $region6: #{custom_loss_pallas.1} parent=0 // loop_footer
    %s12 = sadd.s32 1, %s8
  $region7: #{custom_loss_pallas.1} parent=0 // loop_footer_branch
    %7 = sbr.rel target = $region3
  $region8: #{custom_loss_pallas.1} parent=0 // loop_exit
    _

</llo_original>
